<compile_context>
chip_gen: v7x
topology: tpu7x:2x2x1
jax: 0.10.0
libtpu: 0.0.40
codegen_flags: <defaults>
</compile_context>

<pallas_src>
import functools

import jax
import jax.numpy as jnp
from jax.experimental import pallas as pl
from jax.experimental.pallas import tpu as pltpu


_CLAMP_MIN = 1e-4  # matches .clamp(min=0.0001, max=1.0); max=1.0 is a no-op.


def _round_up(x, m):
    return (x + m - 1) // m * m


def _pow_gamma(one_minus_p, gamma):
    """(1 - p)**gamma; small integer gammas stay on the VPU."""
    g = float(gamma)
    if g == int(g) and 0 <= int(g) <= 4:
        gi = int(g)
        if gi == 0:
            return jnp.ones_like(one_minus_p)
        out = one_minus_p
        for _ in range(gi - 1):
            out = out * one_minus_p
        return out
    # Non-integer gamma: explicit exp/log (still per-sample only).
    safe = jnp.maximum(one_minus_p, 1e-30)
    return jnp.exp(g * jnp.log(safe))


def _focal_core(x, t, alpha_bcast, class_axis, gamma):
    """Shared log-sum-exp focal-loss math.

    x:           f32 logits tile.
    t:           int32 target ids, broadcastable against x along class_axis.
    alpha_bcast: f32 per-class weights, broadcastable against x.
    Returns the per-sample loss with class_axis reduced (keepdims=True).
    """
    m = jnp.max(x, axis=class_axis, keepdims=True)
    lse = jnp.log(jnp.sum(jnp.exp(x - m), axis=class_axis, keepdims=True))

    cls = jax.lax.broadcasted_iota(jnp.int32, x.shape, class_axis)
    onehot = (cls == t).astype(jnp.float32)
    x_t = jnp.sum(onehot * x, axis=class_axis, keepdims=True)
    alpha_t = jnp.sum(onehot * alpha_bcast, axis=class_axis, keepdims=True)

    logp_t = (x_t - m) - lse
    # clamp-before-log semantics of the reference: p in [1e-4, 1].
    logp_t = jnp.maximum(logp_t, jnp.log(jnp.float32(_CLAMP_MIN)))
    p_t = jnp.maximum(jnp.exp(logp_t), jnp.float32(_CLAMP_MIN))

    return -alpha_t * _pow_gamma(1.0 - p_t, gamma) * logp_t


def _focal_kernel_lane_dense(pred_ref, tgt_ref, alpha_ref, out_ref, acc_ref,
                             *, gamma, n_valid, tile_n):
    # pred_ref: (C, TILE_N)  -- classes on sublanes, samples on lanes.
    # tgt_ref:  (1, TILE_N) int32, alpha_ref: (C, 1) f32.
    p_id = pl.program_id(0)
    s_id = pl.program_id(1)
    n_steps = pl.num_programs(1)

    @pl.when(s_id == 0)
    def _():
        acc_ref[...] = jnp.zeros_like(acc_ref)

    x = pred_ref[...].astype(jnp.float32)        # (C, TILE_N)
    t = tgt_ref[...]                             # (1, TILE_N)
    alpha = alpha_ref[...].astype(jnp.float32)   # (C, 1)

    loss = _focal_core(x, t, alpha, class_axis=0, gamma=gamma)  # (1, TILE_N)

    # Mask padded samples.
    lane = jax.lax.broadcasted_iota(jnp.int32, loss.shape, 1)
    sample = (p_id * n_steps + s_id) * tile_n + lane
    loss = jnp.where(sample < n_valid, loss, 0.0)

    acc_ref[...] += loss                          # lane-wide partial sums

    @pl.when(s_id == n_steps - 1)
    def _():
        total = jnp.sum(acc_ref[...])             # one cross-lane reduce / chunk
        lanes = jax.lax.broadcasted_iota(jnp.int32, out_ref.shape, 1)
        out_ref[...] = jnp.where(lanes == 0, total, 0.0)


def _focal_kernel_row_major(pred_ref, tgt_ref, alpha_ref, out_ref, acc_ref,
                            *, gamma, n_valid, tile_n):
    # pred_ref: (TILE_N, C) with C a multiple of 128 (already lane-dense).
    p_id = pl.program_id(0)
    s_id = pl.program_id(1)
    n_steps = pl.num_programs(1)

    @pl.when(s_id == 0)
    def _():
        acc_ref[...] = jnp.zeros_like(acc_ref)

    x = pred_ref[...].astype(jnp.float32)        # (TILE_N, C)
    t = tgt_ref[...]                             # (TILE_N, 1)
    alpha = alpha_ref[...].astype(jnp.float32)   # (1, C)

    loss = _focal_core(x, t, alpha, class_axis=1, gamma=gamma)  # (TILE_N, 1)

    row = jax.lax.broadcasted_iota(jnp.int32, loss.shape, 0)
    sample = (p_id * n_steps + s_id) * tile_n + row
    loss = jnp.where(sample < n_valid, loss, 0.0)

    acc_ref[...] += loss                          # per-sublane partial sums

    @pl.when(s_id == n_steps - 1)
    def _():
        total = jnp.sum(acc_ref[...])
        lanes = jax.lax.broadcasted_iota(jnp.int32, out_ref.shape, 1)
        out_ref[...] = jnp.where(lanes == 0, total, 0.0)


def focal_loss(pred, target, alpha_vec, *, gamma=2.0, average=True,
               tile_n=None, num_chunks=2, tile_bytes_budget=2 << 20):
    """Focal loss matching the PyTorch module's forward.

    pred: (N, C) float32 or bfloat16 logits.
    target: (N,) integer class ids.
    alpha_vec: (C,) per-class weights.
    """
    N, C = pred.shape
    if pred.dtype not in (jnp.dtype(jnp.float32), jnp.dtype(jnp.bfloat16)):
        pred = pred.astype(jnp.float32)
    itemsize = jnp.dtype(pred.dtype).itemsize

    target = target.astype(jnp.int32)
    alpha_vec = alpha_vec.astype(jnp.float32)

    # Samples go to lanes when the class axis is not lane-aligned (e.g. C=4).
    lane_dense = (C % 128 != 0)

    # Tile sizing: biggest sample tile whose pred slab stays within a budget
    # that is safe against the default scoped VMEM on all generations
    # (16 MiB v5e / 32 MiB v6e,v7x), accounting for double buffering.
    if tile_n is None:
        cap = tile_bytes_budget // (C * itemsize)
        cap = max(128, (cap // 128) * 128)
        tile_n = int(min(cap, 32768, _round_up(N, 128)))
    tile_n = max(128, _round_up(int(tile_n), 128))

    total_steps = -(-N // tile_n)                       # cdiv
    n_chunks = num_chunks if total_steps >= num_chunks else 1
    total_steps = _round_up(total_steps, n_chunks)
    steps_per_chunk = total_steps // n_chunks
    n_pad = total_steps * tile_n

    if n_pad != N:
        pred = jnp.pad(pred, ((0, n_pad - N), (0, 0)))
        target = jnp.pad(target, (0, n_pad - N))

    if lane_dense:
        kernel = functools.partial(_focal_kernel_lane_dense, gamma=float(gamma),
                                   n_valid=N, tile_n=tile_n)
        operands = (pred.T, target.reshape(1, n_pad), alpha_vec.reshape(C, 1))
        in_specs = [
            pl.BlockSpec((C, tile_n),
                         lambda p, s, _n=steps_per_chunk: (0, p * _n + s)),
            pl.BlockSpec((1, tile_n),
                         lambda p, s, _n=steps_per_chunk: (0, p * _n + s)),
            pl.BlockSpec((C, 1), lambda p, s: (0, 0)),     # alpha resident
        ]
        scratch = [pltpu.VMEM((1, tile_n), jnp.float32)]
    else:
        kernel = functools.partial(_focal_kernel_row_major, gamma=float(gamma),
                                   n_valid=N, tile_n=tile_n)
        operands = (pred, target.reshape(n_pad, 1), alpha_vec.reshape(1, C))
        in_specs = [
            pl.BlockSpec((tile_n, C),
                         lambda p, s, _n=steps_per_chunk: (p * _n + s, 0)),
            pl.BlockSpec((tile_n, 1),
                         lambda p, s, _n=steps_per_chunk: (p * _n + s, 0)),
            pl.BlockSpec((1, C), lambda p, s: (0, 0)),     # alpha resident
        ]
        scratch = [pltpu.VMEM((tile_n, 1), jnp.float32)]

    partials = pl.pallas_call(
        kernel,
        out_shape=jax.ShapeDtypeStruct((1, n_chunks * 128), jnp.float32),
        grid_spec=pltpu.PrefetchScalarGridSpec(
            num_scalar_prefetch=0,
            grid=(n_chunks, steps_per_chunk),
            in_specs=in_specs,
            out_specs=pl.BlockSpec((1, 128), lambda p, s: (0, p)),
            scratch_shapes=scratch,
        ),
        compiler_params=pltpu.CompilerParams(
            # Chunks of the sample axis can be split across TensorCores
            # (v7x megacore); the inner axis is a sequential reduction.
            dimension_semantics=("parallel", "arbitrary"),
        ),
    )(*operands)

    loss_sum = jnp.sum(partials)   # only lane 0 of each chunk is non-zero
    if average:
        return loss_sum / jnp.float32(N)
    return loss_sum


def _reference_focal_loss(pred, target, alpha_vec, gamma=2.0, average=True):
    # Pure-JAX reference mirroring the PyTorch module.
    p = jax.nn.softmax(pred.astype(jnp.float32), axis=1)
    p = jnp.clip(p, 0.0001, 1.0)
    logp = jnp.log(p)
    idx = jnp.arange(pred.shape[0])
    p_t = p[idx, target]
    logp_t = logp[idx, target]
    a_t = alpha_vec[target]
    loss = a_t * (-((1.0 - p_t) ** gamma) * logp_t)
    return loss.mean() if average else loss.sum()


if __name__ == "__main__":
    gamma = 2.0
    alpha_scalar = 0.25

    def make_alpha(num_classes):
        # Mirrors __init__: alpha = [a, 1-a, ..., 1-a]
        a = jnp.full((num_classes,), 1.0 - alpha_scalar, dtype=jnp.float32)
        return a.at[0].set(alpha_scalar)

    key = jax.random.PRNGKey(0)
    k1, k2, k3, k4 = jax.random.split(key, 4)

    # Case 1: small class count (lane-dense path), N not a multiple of the tile.
    num_classes, N = 4, 16
    pred = jax.random.normal(k1, (N, num_classes), dtype=jnp.float32)
    target = jax.random.randint(k2, (N,), 0, num_classes, dtype=jnp.int32)
    alpha_vec = make_alpha(num_classes)
    loss = jax.block_until_ready(
        focal_loss(pred, target, alpha_vec, gamma=gamma, average=True))
    ref = _reference_focal_loss(pred, target, alpha_vec, gamma=gamma, average=True)
    assert jnp.allclose(loss, ref, rtol=1e-5, atol=1e-5), (loss, ref)

    # Case 2: lane-aligned class count (row-major path), sum reduction.
    num_classes2, N2 = 128, 48
    pred2 = jax.random.normal(k3, (N2, num_classes2), dtype=jnp.float32)
    target2 = jax.random.randint(k4, (N2,), 0, num_classes2, dtype=jnp.int32)
    alpha_vec2 = make_alpha(num_classes2)
    loss2 = jax.block_until_ready(
        focal_loss(pred2, target2, alpha_vec2, gamma=gamma, average=False))
    ref2 = _reference_focal_loss(pred2, target2, alpha_vec2, gamma=gamma,
                                 average=False)
    assert jnp.allclose(loss2, ref2, rtol=1e-5, atol=1e-5), (loss2, ref2)

    print("KERNEL_OK")
</pallas_src>

<mosaic_0001>
module attributes {stable_mosaic.version = 11 : i64} {
  func.func @_focal_kernel_lane_dense(%arg0: i32, %arg1: i32, %arg2: memref<4x128xf32, #tpu.memory_space<vmem>>, %arg3: memref<1x128xi32, #tpu.memory_space<vmem>>, %arg4: memref<4x1xf32, #tpu.memory_space<vmem>>, %arg5: memref<1x128xf32, #tpu.memory_space<vmem>>, %arg6: memref<1x128xf32, #tpu.memory_space<vmem>>) attributes {dimension_semantics = [#tpu.dimension_semantics<parallel>, #tpu.dimension_semantics<arbitrary>], iteration_bounds = array<i64: 1, 1>, scalar_prefetch = 0 : i64, scratch_operands = 1 : i64, tpu.core_type = #tpu.core_type<tc>, window_params = [{transform_indices = @transform_0, window_bounds = array<i64: 4, 128>}, {transform_indices = @transform_1, window_bounds = array<i64: 1, 128>}, {pipeline_mode = #tpu.pipeline_mode<synchronous>, transform_indices = @transform_2, window_bounds = array<i64: 4, 1>}, {transform_indices = @transform_3, window_bounds = array<i64: 1, 128>}]} {
    %c0_i32 = arith.constant 0 : i32
    %0 = arith.cmpi eq, %arg1, %c0_i32 : i32
    %1 = arith.extui %0 : i1 to i32
    %c0_i32_0 = arith.constant 0 : i32
    %2 = arith.cmpi ne, %1, %c0_i32_0 : i32
    scf.if %2 {
      %cst_20 = arith.constant 0.000000e+00 : f32
      %57 = vector.broadcast %cst_20 : f32 to vector<1x128xf32>
      %c0_21 = arith.constant 0 : index
      %c0_22 = arith.constant 0 : index
      %58 = vector.load %arg6[%c0_21, %c0_22] : memref<1x128xf32, #tpu.memory_space<vmem>>, vector<1x128xf32>
      tpu.vector_store %arg6[%c0_21, %c0_22], %57 {strides = array<i32>} : memref<1x128xf32, #tpu.memory_space<vmem>>, vector<1x128xf32>,
    } else {
    }
    %c0 = arith.constant 0 : index
    %c0_1 = arith.constant 0 : index
    %3 = vector.load %arg2[%c0, %c0_1] : memref<4x128xf32, #tpu.memory_space<vmem>>, vector<4x128xf32>
    %c0_2 = arith.constant 0 : index
    %c0_3 = arith.constant 0 : index
    %4 = vector.load %arg3[%c0_2, %c0_3] : memref<1x128xi32, #tpu.memory_space<vmem>>, vector<1x128xi32>
    %c0_4 = arith.constant 0 : index
    %c0_5 = arith.constant 0 : index
    %5 = vector.load %arg4[%c0_4, %c0_5] : memref<4x1xf32, #tpu.memory_space<vmem>>, vector<4x1xf32>
    %cst = arith.constant dense<0xFF800000> : vector<128xf32>
    %6 = vector.multi_reduction <maximumf>, %3, %cst [0] : vector<4x128xf32> to vector<128xf32>
    %7 = vector.shape_cast %6 : vector<128xf32> to vector<1x128xf32>
    %8 = vector.broadcast %7 : vector<1x128xf32> to vector<4x128xf32>
    %9 = arith.subf %3, %8 : vector<4x128xf32>
    %10 = math.exp %9 : vector<4x128xf32>
    %cst_6 = arith.constant dense<0.000000e+00> : vector<128xf32>
    %11 = vector.multi_reduction <add>, %10, %cst_6 [0] : vector<4x128xf32> to vector<128xf32>
    %12 = vector.shape_cast %11 : vector<128xf32> to vector<1x128xf32>
    %13 = math.log %12 : vector<1x128xf32>
    %14 = tpu.iota {dimensions = array<i32: 0>} : vector<4x128xi32>
    %15 = vector.broadcast %4 : vector<1x128xi32> to vector<4x128xi32>
    %16 = arith.cmpi eq, %14, %15 : vector<4x128xi32>
    %17 = arith.extui %16 : vector<4x128xi1> to vector<4x128xi32>
    %18 = arith.sitofp %17 : vector<4x128xi32> to vector<4x128xf32>
    %19 = arith.mulf %18, %3 : vector<4x128xf32>
    %cst_7 = arith.constant dense<0.000000e+00> : vector<128xf32>
    %20 = vector.multi_reduction <add>, %19, %cst_7 [0] : vector<4x128xf32> to vector<128xf32>
    %21 = vector.shape_cast %20 : vector<128xf32> to vector<1x128xf32>
    %22 = vector.broadcast %5 : vector<4x1xf32> to vector<4x128xf32>
    %23 = arith.mulf %18, %22 : vector<4x128xf32>
    %cst_8 = arith.constant dense<0.000000e+00> : vector<128xf32>
    %24 = vector.multi_reduction <add>, %23, %cst_8 [0] : vector<4x128xf32> to vector<128xf32>
    %25 = vector.shape_cast %24 : vector<128xf32> to vector<1x128xf32>
    %26 = arith.subf %21, %7 : vector<1x128xf32>
    %27 = arith.subf %26, %13 : vector<1x128xf32>
    %cst_9 = arith.constant 9.99999974E-5 : f32
    %28 = math.log %cst_9 : f32
    %29 = vector.broadcast %28 : f32 to vector<1x128xf32>
    %30 = arith.maximumf %27, %29 : vector<1x128xf32>
    %31 = math.exp %30 : vector<1x128xf32>
    %cst_10 = arith.constant 9.99999974E-5 : f32
    %32 = vector.broadcast %cst_10 : f32 to vector<1x128xf32>
    %33 = arith.maximumf %31, %32 : vector<1x128xf32>
    %cst_11 = arith.constant 0.000000e+00 : f32
    %34 = vector.broadcast %cst_11 : f32 to vector<1x128xf32>
    %35 = arith.subf %34, %25 : vector<1x128xf32>
    %cst_12 = arith.constant 1.000000e+00 : f32
    %36 = vector.broadcast %cst_12 : f32 to vector<1x128xf32>
    %37 = arith.subf %36, %33 : vector<1x128xf32>
    %38 = arith.mulf %37, %37 : vector<1x128xf32>
    %39 = arith.mulf %35, %38 : vector<1x128xf32>
    %40 = arith.mulf %39, %30 : vector<1x128xf32>
    %41 = tpu.iota {dimensions = array<i32: 1>} : vector<1x128xi32>
    %c1_i32 = arith.constant 1 : i32
    %42 = arith.muli %arg0, %c1_i32 : i32
    %43 = arith.addi %42, %arg1 : i32
    %c128_i32 = arith.constant 128 : i32
    %44 = arith.muli %43, %c128_i32 : i32
    %45 = vector.broadcast %44 : i32 to vector<1x128xi32>
    %46 = arith.addi %45, %41 : vector<1x128xi32>
    %c16_i32 = arith.constant 16 : i32
    %47 = vector.broadcast %c16_i32 : i32 to vector<1x128xi32>
    %48 = arith.cmpi slt, %46, %47 : vector<1x128xi32>
    %cst_13 = arith.constant 0.000000e+00 : f32
    %49 = vector.broadcast %cst_13 : f32 to vector<1x128xf32>
    %50 = arith.select %48, %40, %49 : vector<1x128xi1>, vector<1x128xf32>
    %c0_14 = arith.constant 0 : index
    %c0_15 = arith.constant 0 : index
    %51 = vector.load %arg6[%c0_14, %c0_15] : memref<1x128xf32, #tpu.memory_space<vmem>>, vector<1x128xf32>
    %52 = arith.addf %51, %50 : vector<1x128xf32>
    %c0_16 = arith.constant 0 : index
    %c0_17 = arith.constant 0 : index
    %53 = vector.load %arg6[%c0_16, %c0_17] : memref<1x128xf32, #tpu.memory_space<vmem>>, vector<1x128xf32>
    tpu.vector_store %arg6[%c0_16, %c0_17], %52 {strides = array<i32>} : memref<1x128xf32, #tpu.memory_space<vmem>>, vector<1x128xf32>,
    %c0_i32_18 = arith.constant 0 : i32
    %54 = arith.cmpi eq, %arg1, %c0_i32_18 : i32
    %55 = arith.extui %54 : i1 to i32
    %c0_i32_19 = arith.constant 0 : i32
    %56 = arith.cmpi ne, %55, %c0_i32_19 : i32
    scf.if %56 {
      %c0_20 = arith.constant 0 : index
      %c0_21 = arith.constant 0 : index
      %57 = vector.load %arg6[%c0_20, %c0_21] : memref<1x128xf32, #tpu.memory_space<vmem>>, vector<1x128xf32>
      %58 = vector.shape_cast %57 : vector<1x128xf32> to vector<1x1x128xf32>
      %cst_22 = arith.constant dense<0.000000e+00> : vector<1xf32>
      %59 = vector.multi_reduction <add>, %58, %cst_22 [1, 2] : vector<1x1x128xf32> to vector<1xf32>
      %60 = vector.shape_cast %59 : vector<1xf32> to vector<1x1x1xf32>
      %61 = vector.extract %60[0, 0, 0] : f32 from vector<1x1x1xf32>
      %62 = tpu.iota {dimensions = array<i32: 1>} : vector<1x128xi32>
      %c0_i32_23 = arith.constant 0 : i32
      %63 = vector.broadcast %c0_i32_23 : i32 to vector<1x128xi32>
      %64 = arith.cmpi eq, %62, %63 : vector<1x128xi32>
      %cst_24 = arith.constant 0.000000e+00 : f32
      %65 = vector.broadcast %61 : f32 to vector<1x128xf32>
      %66 = vector.broadcast %cst_24 : f32 to vector<1x128xf32>
      %67 = arith.select %64, %65, %66 : vector<1x128xi1>, vector<1x128xf32>
      %c0_25 = arith.constant 0 : index
      %c0_26 = arith.constant 0 : index
      %68 = vector.load %arg5[%c0_25, %c0_26] : memref<1x128xf32, #tpu.memory_space<vmem>>, vector<1x128xf32>
      tpu.vector_store %arg5[%c0_25, %c0_26], %67 {strides = array<i32>} : memref<1x128xf32, #tpu.memory_space<vmem>>, vector<1x128xf32>,
    } else {
    }
    return
  }
  func.func @transform_0(%arg0: i32, %arg1: i32) -> (i32, i32) {
    %c1_i32 = arith.constant 1 : i32
    %0 = arith.muli %arg0, %c1_i32 : i32
    %1 = arith.addi %0, %arg1 : i32
    %c0_i32 = arith.constant 0 : i32
    %c0_i32_0 = arith.constant 0 : i32
    return %c0_i32, %1 : i32, i32
  }
  func.func @transform_1(%arg0: i32, %arg1: i32) -> (i32, i32) {
    %c1_i32 = arith.constant 1 : i32
    %0 = arith.muli %arg0, %c1_i32 : i32
    %1 = arith.addi %0, %arg1 : i32
    %c0_i32 = arith.constant 0 : i32
    %c0_i32_0 = arith.constant 0 : i32
    return %c0_i32, %1 : i32, i32
  }
  func.func @transform_2(%arg0: i32, %arg1: i32) -> (i32, i32) {
    %c0_i32 = arith.constant 0 : i32
    %c0_i32_0 = arith.constant 0 : i32
    %c0_i32_1 = arith.constant 0 : i32
    return %c0_i32, %c0_i32_0 : i32, i32
  }
  func.func @transform_3(%arg0: i32, %arg1: i32) -> (i32, i32) {
    %c0_i32 = arith.constant 0 : i32
    %c0_i32_0 = arith.constant 0 : i32
    return %c0_i32, %arg0 : i32, i32
  }
}

</mosaic_0001>

<llo_original>
// kernel: tpu_custom_call.1
$region0: #{tpu_custom_call.1}
  #allocation0 [shape = 'u32[]', space=smem, size = 0x4, offset = 0x4, fixed_abs, tag = 'smem constant byte address 0x4 - core index']
  #allocation1 [shape = 'u32[144,128]{1,0:T(1,128)}', space=vmem, size = 0x12000, scoped, tag = 'internal scratch']
  #allocation2 [shape = 'f32[1,128]{1,0:T(1,128)}', space=vmem, size = 0x200, scoped, tag = 'scratch operand']
  %s0 = inlined_call_operand.vmem [shape: f32[4,128], index: 0, kind: input, shape index: {}]
  %s1 = inlined_call_operand.vmem [shape: s32[1,128], index: 1, kind: input, shape index: {}]
  %s2 = inlined_call_operand.vmem [shape: f32[4,1], index: 2, kind: input, shape index: {}]
  %s3 = inlined_call_operand.hbm [shape: f32[1,128], index: 3, kind: output, shape index: {}]
  %s4 = sld [smem:[#allocation0]]
  $region30: #{tpu_custom_call.1} parent=0
    _
  %s6 = ssub.s32 1, %s4
  %s7 = scalar_select 0, %s6, %s4
  $region1: #{tpu_custom_call.1} parent=0
    #allocation3 [shape = 'u8[512]{0}', space=vmem, size = 0x400, scoped, tag = 'output window, operand 0, single buffered']
    #allocation4 [shape = 's32[1]{0}', space=sflag, size = 0x4, scoped, tag = 'scoped memory for tpu_custom_call.1']
    %8 = vsyncpa [#allocation4], 0
    // Predicated region
    $region2: #{tpu_custom_call.1} parent=1 // pred_check
      _
    $region3: #{tpu_custom_call.1} parent=1 // pred_check_branch
      %10 = sbr.rel (0) target = $region5
    $region4: #{tpu_custom_call.1} parent=1 // pred_region
      %s11 = sadd.s32 0, 0
      %p12 = scmp.lt.s32.totalorder %s11, 0
      %s13 = scalar_select %p12, %s11, 0
      %s14 = smul.addr %s13, 4
      %s15 = scalar_lea.vmem %s0, %s14
      %s16 = sadd.s32 0, 0
    $region5: #{tpu_custom_call.1} parent=1 // pred_fallthru
      _
    // Predicated region
    $region6: #{tpu_custom_call.1} parent=1 // pred_check
      _
    $region7: #{tpu_custom_call.1} parent=1 // pred_check_branch
      %18 = sbr.rel (0) target = $region9
    $region8: #{tpu_custom_call.1} parent=1 // pred_region
      %s19 = sadd.s32 0, 0
      %p20 = scmp.lt.s32.totalorder %s19, 0
      %s21 = scalar_select %p20, %s19, 0
      %s22 = scalar_lea.vmem %s1, %s21
      %s23 = sadd.s32 0, 0
    $region9: #{tpu_custom_call.1} parent=1 // pred_fallthru
      _
    // Predicated region
    $region10: #{tpu_custom_call.1} parent=1 // pred_check
      _
    $region11: #{tpu_custom_call.1} parent=1 // pred_check_branch
      %25 = sbr.rel (0) target = $region13
    $region12: #{tpu_custom_call.1} parent=1 // pred_region
      _
    $region13: #{tpu_custom_call.1} parent=1 // pred_fallthru
      _
    %s26 = sadd.s32 0, 0
    %p27 = scmp.lt.s32.totalorder %s26, 0
    %s28 = scalar_select %p27, %s26, 0
    %s29 = smul.addr %s28, 4
    %s30 = scalar_lea.vmem %s0, %s29
    %s31 = sadd.s32 0, 0
    %p32 = scmp.lt.s32.totalorder %s31, 0
    %s33 = scalar_select %p32, %s31, 0
    %s34 = scalar_lea.vmem %s1, %s33
    %s35 = sadd.s32 0, 0
    %p36 = scmp.lt.s32.totalorder %s35, 0
    %s37 = scalar_select %p36, %s35, 0
    %s38 = smul.addr %s37, 4
    %s39 = scalar_lea.vmem %s0, %s38
    %s40 = sadd.s32 0, 0
    %s41 = sadd.s32 0, 0
    %p42 = scmp.lt.s32.totalorder %s41, 0
    %s43 = scalar_select %p42, %s41, 0
    %s44 = scalar_lea.vmem %s1, %s43
    %s45 = sadd.s32 0, 0
    %p46 = scmp.eq.s32.totalorder 0, 0
    // Predicated region
    $region14: #{tpu_custom_call.1} parent=1 // pred_check
      %p47 = pneg %p46
    $region15: #{tpu_custom_call.1} parent=1 // pred_check_branch
      %49 = sbr.rel (%p47) target = $region17
    $region16: #{tpu_custom_call.1} parent=1 // pred_region
      %50 = vst [vmem:[#allocation2] sm:$0x1] 0.0
    $region17: #{tpu_custom_call.1} parent=1 // pred_fallthru
      _
    %v51 = vld [vmem:[%s39] sm:$0xf]
    %v52 = vld [vmem:[%s44] sm:$0x1]
    %v53 = vld [vmem:[%s2] sm:$0xf]
    %vm54 = vcmask 1043456
    %v55 = vsel %vm54, %v51, -inf
    %v56 = vrot.slane %v55, 4
    %v57 = vmax.f32 %v55, %v56
    %v58 = vrot.slane %v57, 2
    %v59 = vmax.f32 %v57, %v58
    %v60 = vrot.slane %v59, 1
    %v61 = vmax.f32 %v59, %v60
    %v62 = vsub.f32 %v51, %v61
    %v63 = vmul.f32 %v62, 1.442695
    %v64 = vpow.pop %v63
    %v65 = vsel %vm54, %v64, 0.0
    %v66 = vrot.slane %v65, 4
    %v67 = vadd.f32 %v65, %v66
    %v68 = vrot.slane %v67, 2
    %v69 = vadd.f32 %v67, %v68
    %v70 = vrot.slane %v69, 1
    %v71 = vadd.f32 %v69, %v70
    %v72 = vlog2.pop %v71
    %v73 = vmul.f32 %v72, 0.6931472
    %v74 = vlaneseq
    %v75 = vshrl.u32 %v74, 7
    %v76 = vlaneseq
    %v77 = vshrl.u32 %v76, 7
    %v78 = vsub.s32 0, %v77
    %v79 = vrot.slane %v52, %v78
    %vm80 = vcmp.eq.s32.totalorder %v75, %v79
    %v81 = vsel %vm80, 1, 0
    %v82 = vcvt.s32.f32 %v81
    %v83 = vmul.f32 %v82, %v51
    %v84 = vsel %vm54, %v83, 0.0
    %v85 = vrot.slane %v84, 4
    %v86 = vadd.f32 %v84, %v85
    %v87 = vrot.slane %v86, 2
    %v88 = vadd.f32 %v86, %v87
    %v89 = vrot.slane %v88, 1
    %v90 = vadd.f32 %v88, %v89
    %92 = vset.pattern.permute.xlu0 0
    %93 = vperm.xlu0 %92, %v53
    %v94 = vpop.permute.xlu0 %93
    %v96 = vmul.f32 %v82, %v94
    %v97 = vsel %vm54, %v96, 0.0
    %v98 = vrot.slane %v97, 4
    %v99 = vadd.f32 %v97, %v98
    %v100 = vrot.slane %v99, 2
    %v101 = vadd.f32 %v99, %v100
    %v102 = vrot.slane %v101, 1
    %v103 = vadd.f32 %v101, %v102
    %v104 = vsub.f32 %v90, %v61
    %v105 = vsub.f32 %v104, %v73
    %v106 = vmax.f32 %v105, -9.2103405
    %v107 = vmul.f32 %v106, 1.442695
    %v108 = vpow.pop %v107
    %v109 = vmax.f32 %v108, 0.0001
    %v110 = vsub.f32 0.0, %v103
    %v111 = vsub.f32 1.0, %v109
    %v112 = vmul.f32 %v111, %v111
    %v113 = vmul.f32 %v110, %v112
    %v114 = vmul.f32 %v113, %v106
    %v115 = vlaneseq
    %v116 = vand.u32 %v115, 127
    %s117 = sadd.s32 0, 0
    %s118 = smul.u32 %s117, 128
    %v119 = vstv %s118
    %v120 = vadd.s32 %v119, %v116
    %vm121 = vcmp.lt.s32.totalorder %v120, 16
    %v122 = vsel %vm121, %v114, 0.0
    %v123 = vld [vmem:[#allocation2] sm:$0x1]
    %v124 = vadd.f32 %v123, %v122
    %125 = vst [vmem:[#allocation2] sm:$0x1] %v124
    // Predicated region
    $region18: #{tpu_custom_call.1} parent=1 // pred_check
      %p126 = pneg %p46
    $region19: #{tpu_custom_call.1} parent=1 // pred_check_branch
      %128 = sbr.rel (%p126) target = $region21
    $region20: #{tpu_custom_call.1} parent=1 // pred_region
      %v129 = vld [vmem:[#allocation2] sm:$0x1]
      %vm130 = vcmask 1040384
      %v131 = vsel %vm130, %v129, 0.0
      %132 = vadd.xlane.f32.xlu0 %v131
      %v133 = vpop.xlane.xlu0 %132
      %v134 = vrot.slane %v133, 4
      %v135 = vadd.f32 %v133, %v134
      %v136 = vrot.slane %v135, 2
      %v137 = vadd.f32 %v135, %v136
      %v138 = vrot.slane %v137, 1
      %v139 = vadd.f32 %v137, %v138
      %s140 = vtos %v139
      %vm141 = vcmp.eq.s32.totalorder %v116, 0
      %v142 = vstv %s140
      %v143 = vsel %vm141, %v142, 0.0
      %144 = vst [vmem:[#allocation3] sm:$0x1] %v143
    $region21: #{tpu_custom_call.1} parent=1 // pred_fallthru
      _
    // Predicated region
    $region22: #{tpu_custom_call.1} parent=1 // pred_check
      _
    $region23: #{tpu_custom_call.1} parent=1 // pred_check_branch
      %146 = sbr.rel (0) target = $region25
    $region24: #{tpu_custom_call.1} parent=1 // pred_region
      %s148 = ssub.s32 16, 16
      %149 = vsyncadd [#allocation4], %s148
      %s151 = sshll.u32 [#allocation3], 4
      %s152 = int_to_ptr.vmem [resolvable:$true] %s151
      %154 = dma.vmem_to_hbm [thread:$0]  %s152, 16, %s3, [#allocation4]
    $region25: #{tpu_custom_call.1} parent=1 // pred_fallthru
      _
    // Predicated region
    $region26: #{tpu_custom_call.1} parent=1 // pred_check
      _
    $region27: #{tpu_custom_call.1} parent=1 // pred_check_branch
      %156 = sbr.rel (0) target = $region29
    $region28: #{tpu_custom_call.1} parent=1 // pred_region
      %157 = dma.done [#allocation4], 16
    $region29: #{tpu_custom_call.1} parent=1 // pred_fallthru
      _
    %158 = vsyncpa [#allocation4], 1

</llo_original>
